<compile_context>
chip_gen: v6e
topology: v6e:2x2x1
jax: 0.10.0
libtpu: 0.0.40
codegen_flags: <defaults>
</compile_context>

<pallas_src>
import jax
import jax.numpy as jnp
from jax.experimental import pallas as pl
from jax.experimental.pallas import tpu as pltpu

N_BITS = 8
QMAX = float(2 ** (N_BITS - 1))          # 128.0
LANE = 128


def _round_up(x, m):
    return pl.cdiv(x, m) * m


def _vmem_budget_bytes():
    """Per-core VMEM budget derived from the actual chip generation."""
    try:
        cap = int(pltpu.get_tpu_info().vmem_capacity_bytes)
    except Exception:
        cap = 64 << 20                   # unknown part / emulator: assume the smallest (v7x)
    return int(cap * 0.85)               # ~54 MiB on v7x, ~108 MiB on v5e/v6e


# ----------------------------- Pallas kernels -------------------------------------------------

def _quantize_weight_kernel(w_ref, delta_ref, wq_ref):
    """GPTQ symmetric per-output-channel fake-quant of one (K, cn) weight column block.

    w_ref:     (K, cn) f32   float weight, K-major (lane axis = output channel)
    delta_ref: (1, cn) f32   per-channel step = threshold / 2^(n_bits-1)
    wq_ref:    (K, cn) bf16  fake-quantized weight, MXU-ready
    """
    w = w_ref[...]
    delta = delta_ref[...]                                   # (1, cn) broadcasts over K rows
    q = jnp.clip(jnp.round(w / delta), -QMAX, QMAX - 1.0)
    wq_ref[...] = (q * delta).astype(wq_ref.dtype)


def _matmul_bias_kernel(p_ref, wq_ref, b_ref, o_ref):
    """Single-K-block path: o = p @ wq + bias (bf16 MXU feed, f32 accumulation)."""
    acc = jnp.dot(p_ref[...], wq_ref[...], preferred_element_type=jnp.float32)
    o_ref[...] = (acc + b_ref[...]).astype(o_ref.dtype)


def _matmul_bias_ktiled_kernel(p_ref, wq_ref, b_ref, o_ref, acc_ref):
    """K-tiled path: accumulate over the innermost ("arbitrary") K grid axis."""
    @pl.when(pl.program_id(1) == 0)
    def _():
        acc_ref[...] = jnp.zeros_like(acc_ref)

    acc_ref[...] += jnp.dot(p_ref[...], wq_ref[...], preferred_element_type=jnp.float32)

    @pl.when(pl.program_id(1) == pl.num_programs(1) - 1)
    def _():
        o_ref[...] = (acc_ref[...] + b_ref[...]).astype(o_ref.dtype)


# ----------------------------- forward wrapper -------------------------------------------------

@jax.jit
def weight_quantizer_wrapper_forward(x, weight, bias, threshold):
    """Forward pass of WeightQuantizerWrapper wrapping a padding='same' Conv2d.

    x:         (N, C_in, H, W)          NCHW
    weight:    (C_out, C_in, kH, kW)    float ("self.float_weight")
    bias:      (C_out,)
    threshold: (C_out,)                 weight-quantizer parameter
    returns:   (N, C_out, H, W)         NCHW, float32
    """
    N, C_in, H, W = x.shape
    C_out, C_in_w, kH, kW = weight.shape
    assert C_in == C_in_w
    ph, pw = kH // 2, kW // 2

    K = C_in * kH * kW
    M = N * H * W

    # Lane alignment for output channels: 256 keeps the v6e/v7x 256x256 MXU full when C_out
    # is large; 128 otherwise (avoids pad blow-up for small layers).
    lane_c = 256 if C_out >= 256 else LANE
    Cp = _round_up(C_out, lane_c)

    budget = _vmem_budget_bytes()

    # ---- decide K tiling (bound resident bf16 weight block to a fraction of the budget) ----
    Ke = _round_up(K, LANE)              # internal VMEM lane footprint of the K axis
    weight_budget = budget // 3
    if 2 * Ke * Cp * 2 <= weight_budget:
        k_tiled = False
        Kp = K                           # no HBM K padding: block == full array dim is legal
        tk = K
    else:
        k_tiled = True
        tk = LANE * max(1, (weight_budget // (4 * Cp)) // LANE)
        tk = min(tk, Ke)
        Kp = _round_up(K, tk)

    # ---- choose tm: biggest M tile that fits the per-generation VMEM budget ----
    def _vmem_needed(tm_):
        kb = tk if k_tiled else Ke
        p_bytes = 2 * tm_ * kb * 2                 # bf16 patch tiles, double-buffered
        w_bytes = 2 * kb * Cp * 2                  # bf16 weight block, double-buffered
        o_bytes = 2 * tm_ * Cp * 4                 # f32 output tiles, double-buffered
        acc_bytes = (tm_ * Cp * 4) if k_tiled else 0
        misc = 4 * 8 * Cp * 4
        return p_bytes + w_bytes + o_bytes + acc_bytes + misc

    tm_cap = max(LANE, _round_up(M, LANE))
    tm = min(2048, tm_cap)
    while tm > LANE and _vmem_needed(tm) > budget:
        tm = max(LANE, ((tm // 2) // LANE) * LANE)
    # Re-balance tm so the last M tile is not mostly padding.
    n_tiles = pl.cdiv(M, tm)
    tm = min(tm, _round_up(pl.cdiv(M, n_tiles), LANE))
    M_pad = _round_up(M, tm)

    # ---- glue: im2col in NHWC order (feature axis already (C_in, kH, kW)-major) ----
    xnhwc = jnp.transpose(x, (0, 2, 3, 1))                        # (N, H, W, C_in)
    xp = jnp.pad(xnhwc, ((0, 0), (ph, ph), (pw, pw), (0, 0)))
    cols = [xp[:, i:i + H, j:j + W, :] for i in range(kH) for j in range(kW)]
    p = jnp.stack(cols, axis=-1)                                  # (N, H, W, C_in, kH*kW)
    p = p.reshape(M, K).astype(jnp.bfloat16)                      # bf16 halves patch HBM traffic
    p = jnp.pad(p, ((0, M_pad - M), (0, Kp - K)))                 # pad M (and K only if tiled)

    # ---- weight / quant params / bias in lane-dense, K-major layout ----
    w_kc = weight.reshape(C_out, K).T.astype(jnp.float32)         # (K, C_out): transpose ONCE
    w_kc = jnp.pad(w_kc, ((0, Kp - K), (0, Cp - C_out)))
    delta = jnp.maximum(threshold.astype(jnp.float32) / QMAX, 1e-12)   # clamp: no div-by-zero
    delta = jnp.pad(delta, (0, Cp - C_out), constant_values=1.0).reshape(1, Cp)
    b2d = jnp.pad(bias.astype(jnp.float32), (0, Cp - C_out)).reshape(1, Cp)

    # ---- step 1: tiny Pallas kernel -- fake-quantize the weight once to bf16 ----
    cn = LANE
    rows_e = _round_up(Kp, 8)
    quant_vmem = 12 * rows_e * cn + (4 << 20)
    wq = pl.pallas_call(
        _quantize_weight_kernel,
        out_shape=jax.ShapeDtypeStruct((Kp, Cp), jnp.bfloat16),
        grid_spec=pltpu.PrefetchScalarGridSpec(
            num_scalar_prefetch=0,
            grid=(Cp // cn,),
            in_specs=[
                pl.BlockSpec((Kp, cn), lambda j: (0, j)),
                pl.BlockSpec((1, cn), lambda j: (0, j)),
            ],
            out_specs=pl.BlockSpec((Kp, cn), lambda j: (0, j)),
        ),
        compiler_params=pltpu.CompilerParams(
            dimension_semantics=("parallel",),
            vmem_limit_bytes=int(min(max(quant_vmem, 8 << 20), budget)),
        ),
    )(w_kc, delta)

    # ---- step 2: fused matmul + bias on the MXU ----
    matmul_vmem = int(min(_vmem_needed(tm) + (8 << 20), budget))

    if not k_tiled:
        out2d = pl.pallas_call(
            _matmul_bias_kernel,
            out_shape=jax.ShapeDtypeStruct((M_pad, Cp), jnp.float32),
            grid_spec=pltpu.PrefetchScalarGridSpec(
                num_scalar_prefetch=0,
                grid=(M_pad // tm,),
                in_specs=[
                    pl.BlockSpec((tm, Kp), lambda i: (i, 0)),   # patch tile walks M, K unpadded
                    pl.BlockSpec((Kp, Cp), lambda i: (0, 0)),   # bf16 weight: constant block
                    pl.BlockSpec((1, Cp), lambda i: (0, 0)),    # bias (lane-dense)
                ],
                out_specs=pl.BlockSpec((tm, Cp), lambda i: (i, 0)),
            ),
            compiler_params=pltpu.CompilerParams(
                # No cross-tile carried state -> safe to shard M across TensorCores (v7x).
                dimension_semantics=("parallel",),
                vmem_limit_bytes=matmul_vmem,
            ),
        )(p, wq, b2d)
    else:
        out2d = pl.pallas_call(
            _matmul_bias_ktiled_kernel,
            out_shape=jax.ShapeDtypeStruct((M_pad, Cp), jnp.float32),
            grid_spec=pltpu.PrefetchScalarGridSpec(
                num_scalar_prefetch=0,
                grid=(M_pad // tm, Kp // tk),
                in_specs=[
                    pl.BlockSpec((tm, tk), lambda i, k: (i, k)),
                    pl.BlockSpec((tk, Cp), lambda i, k: (k, 0)),
                    pl.BlockSpec((1, Cp), lambda i, k: (0, 0)),
                ],
                out_specs=pl.BlockSpec((tm, Cp), lambda i, k: (i, 0)),
                scratch_shapes=[pltpu.VMEM((tm, Cp), jnp.float32)],
            ),
            compiler_params=pltpu.CompilerParams(
                dimension_semantics=("parallel", "arbitrary"),
                vmem_limit_bytes=matmul_vmem,
            ),
        )(p, wq, b2d)

    # ---- glue: strip padding, back to NCHW ----
    y = out2d[:M, :C_out].reshape(N, H, W, C_out).transpose(0, 3, 1, 2)
    return y


def _reference_forward(x, weight, bias, threshold):
    """Pure-JAX f32 reference: GPTQ fake-quant + conv via lax.conv_general_dilated."""
    delta = (threshold / QMAX).reshape(-1, 1, 1, 1)
    wq = jnp.clip(jnp.round(weight / delta), -QMAX, QMAX - 1.0) * delta
    y = jax.lax.conv_general_dilated(
        x, wq, window_strides=(1, 1), padding="SAME",
        dimension_numbers=("NCHW", "OIHW", "NCHW"))
    return y + bias.reshape(1, -1, 1, 1)


if __name__ == "__main__":
    key = jax.random.PRNGKey(0)
    k_x, k_w, k_b = jax.random.split(key, 3)

    # Small shapes consistent with a Conv2d node: batch=2, C_in=4, 16x16, C_out=8, 3x3 kernel.
    x = jax.random.normal(k_x, (2, 4, 16, 16), dtype=jnp.float32)
    weight = jax.random.normal(k_w, (8, 4, 3, 3), dtype=jnp.float32) * 0.1
    bias = jax.random.normal(k_b, (8,), dtype=jnp.float32) * 0.01
    # Weight-quantizer parameter init (as the quantizer does from the float weight):
    # per-output-channel threshold = max(|W|) over (C_in, kH, kW).
    threshold = jnp.max(jnp.abs(weight), axis=(1, 2, 3))

    y = weight_quantizer_wrapper_forward(x, weight, bias, threshold)
    y = jax.block_until_ready(y)

    y_ref = _reference_forward(x, weight, bias, threshold)
    assert y.shape == (2, 8, 16, 16)
    # Tolerance loosened vs. the pure-f32 reference because the MXU operands (patches, wq)
    # are deliberately fed in bf16 (f32 accumulation); observed error is ~1e-3.
    assert jnp.allclose(y, y_ref, atol=3e-2, rtol=3e-2), "mismatch vs reference"

    print("KERNEL_OK")
</pallas_src>

<mosaic_0001>
module attributes {stable_mosaic.version = 11 : i64} {
  func.func @_matmul_bias_kernel(%arg0: i32, %arg1: memref<512x36xbf16, #tpu.memory_space<vmem>>, %arg2: memref<36x128xbf16, #tpu.memory_space<vmem>>, %arg3: memref<1x128xf32, #tpu.memory_space<vmem>>, %arg4: memref<512x128xf32, #tpu.memory_space<vmem>>) attributes {dimension_semantics = [#tpu.dimension_semantics<parallel>], iteration_bounds = array<i64: 1>, scalar_prefetch = 0 : i64, scratch_operands = 0 : i64, tpu.core_type = #tpu.core_type<tc>, window_params = [{transform_indices = @transform_0, window_bounds = array<i64: 512, 36>}, {pipeline_mode = #tpu.pipeline_mode<synchronous>, transform_indices = @transform_1, window_bounds = array<i64: 36, 128>}, {pipeline_mode = #tpu.pipeline_mode<synchronous>, transform_indices = @transform_2, window_bounds = array<i64: 1, 128>}, {transform_indices = @transform_3, window_bounds = array<i64: 512, 128>}]} {
    %c0 = arith.constant 0 : index
    %c0_0 = arith.constant 0 : index
    %0 = vector.load %arg1[%c0, %c0_0] : memref<512x36xbf16, #tpu.memory_space<vmem>>, vector<512x36xbf16>
    %c0_1 = arith.constant 0 : index
    %c0_2 = arith.constant 0 : index
    %1 = vector.load %arg2[%c0_1, %c0_2] : memref<36x128xbf16, #tpu.memory_space<vmem>>, vector<36x128xbf16>
    %cst = arith.constant dense<0.000000e+00> : vector<512x128xf32>
    %2 = tpu.matmul %0, %1, %cst {dimension_numbers = #tpu.dot_dimension_numbers<[1], [0], [0], [1], [0, 0, 1, 1], [], []>} : vector<512x36xbf16>, vector<36x128xbf16>, vector<512x128xf32> -> vector<512x128xf32>
    %c0_3 = arith.constant 0 : index
    %c0_4 = arith.constant 0 : index
    %3 = vector.load %arg3[%c0_3, %c0_4] : memref<1x128xf32, #tpu.memory_space<vmem>>, vector<1x128xf32>
    %4 = vector.broadcast %3 : vector<1x128xf32> to vector<512x128xf32>
    %5 = arith.addf %2, %4 : vector<512x128xf32>
    %c0_5 = arith.constant 0 : index
    %c0_6 = arith.constant 0 : index
    %6 = vector.load %arg4[%c0_5, %c0_6] : memref<512x128xf32, #tpu.memory_space<vmem>>, vector<512x128xf32>
    tpu.vector_store %arg4[%c0_5, %c0_6], %5 {strides = array<i32>} : memref<512x128xf32, #tpu.memory_space<vmem>>, vector<512x128xf32>,
    return
  }
  func.func @transform_0(%arg0: i32) -> (i32, i32) {
    %c0_i32 = arith.constant 0 : i32
    %c0_i32_0 = arith.constant 0 : i32
    return %arg0, %c0_i32 : i32, i32
  }
  func.func @transform_1(%arg0: i32) -> (i32, i32) {
    %c0_i32 = arith.constant 0 : i32
    %c0_i32_0 = arith.constant 0 : i32
    %c0_i32_1 = arith.constant 0 : i32
    return %c0_i32, %c0_i32_0 : i32, i32
  }
  func.func @transform_2(%arg0: i32) -> (i32, i32) {
    %c0_i32 = arith.constant 0 : i32
    %c0_i32_0 = arith.constant 0 : i32
    %c0_i32_1 = arith.constant 0 : i32
    return %c0_i32, %c0_i32_0 : i32, i32
  }
  func.func @transform_3(%arg0: i32) -> (i32, i32) {
    %c0_i32 = arith.constant 0 : i32
    %c0_i32_0 = arith.constant 0 : i32
    return %arg0, %c0_i32 : i32, i32
  }
}

module attributes {stable_mosaic.version = 11 : i64} {
  func.func @_quantize_weight_kernel(%arg0: i32, %arg1: memref<36x128xf32, #tpu.memory_space<vmem>>, %arg2: memref<1x128xf32, #tpu.memory_space<vmem>>, %arg3: memref<36x128xbf16, #tpu.memory_space<vmem>>) attributes {dimension_semantics = [#tpu.dimension_semantics<parallel>], iteration_bounds = array<i64: 1>, scalar_prefetch = 0 : i64, scratch_operands = 0 : i64, tpu.core_type = #tpu.core_type<tc>, window_params = [{transform_indices = @transform_0, window_bounds = array<i64: 36, 128>}, {transform_indices = @transform_1, window_bounds = array<i64: 1, 128>}, {transform_indices = @transform_2, window_bounds = array<i64: 36, 128>}]} {
    %c0 = arith.constant 0 : index
    %c0_0 = arith.constant 0 : index
    %0 = vector.load %arg1[%c0, %c0_0] : memref<36x128xf32, #tpu.memory_space<vmem>>, vector<36x128xf32>
    %c0_1 = arith.constant 0 : index
    %c0_2 = arith.constant 0 : index
    %1 = vector.load %arg2[%c0_1, %c0_2] : memref<1x128xf32, #tpu.memory_space<vmem>>, vector<1x128xf32>
    %2 = vector.broadcast %1 : vector<1x128xf32> to vector<36x128xf32>
    %3 = arith.divf %0, %2 : vector<36x128xf32>
    %4 = math.roundeven %3 : vector<36x128xf32>
    %cst = arith.constant -1.280000e+02 : f32
    %cst_3 = arith.constant 1.270000e+02 : f32
    %5 = vector.broadcast %cst : f32 to vector<36x128xf32>
    %6 = arith.maximumf %5, %4 : vector<36x128xf32>
    %7 = vector.broadcast %cst_3 : f32 to vector<36x128xf32>
    %8 = arith.minimumf %7, %6 : vector<36x128xf32>
    %9 = vector.broadcast %1 : vector<1x128xf32> to vector<36x128xf32>
    %10 = arith.mulf %8, %9 : vector<36x128xf32>
    %11 = arith.truncf %10 : vector<36x128xf32> to vector<36x128xbf16>
    %c0_4 = arith.constant 0 : index
    %c0_5 = arith.constant 0 : index
    %12 = vector.load %arg3[%c0_4, %c0_5] : memref<36x128xbf16, #tpu.memory_space<vmem>>, vector<36x128xbf16>
    tpu.vector_store %arg3[%c0_4, %c0_5], %11 {strides = array<i32>} : memref<36x128xbf16, #tpu.memory_space<vmem>>, vector<36x128xbf16>,
    return
  }
  func.func @transform_0(%arg0: i32) -> (i32, i32) {
    %c0_i32 = arith.constant 0 : i32
    %c0_i32_0 = arith.constant 0 : i32
    return %c0_i32, %arg0 : i32, i32
  }
  func.func @transform_1(%arg0: i32) -> (i32, i32) {
    %c0_i32 = arith.constant 0 : i32
    %c0_i32_0 = arith.constant 0 : i32
    return %c0_i32, %arg0 : i32, i32
  }
  func.func @transform_2(%arg0: i32) -> (i32, i32) {
    %c0_i32 = arith.constant 0 : i32
    %c0_i32_0 = arith.constant 0 : i32
    return %c0_i32, %arg0 : i32, i32
  }
}

</mosaic_0001>

<llo_original>
// kernel: weight_quantizer_wrapper_forward.2
$region0: #{weight_quantizer_wrapper_forward.2}
  #allocation0 [shape = 'u32[]', space=smem, size = 0x4, offset = 0x4, fixed_abs, tag = 'smem constant byte address 0x4 - core index']
  #allocation1 [shape = 'u32[144,128]{1,0:T(1,128)}', space=vmem, size = 0x12000, scoped, tag = 'internal scratch']
  %s0 = inlined_call_operand.vmem [shape: f32[36,128], index: 0, kind: input, shape index: {}]
  %s1 = inlined_call_operand.vmem [shape: f32[1,128], index: 1, kind: input, shape index: {}]
  %s2 = inlined_call_operand.vmem [shape: bf16[36,128], index: 2, kind: output, shape index: {}]
  %s3 = sld [smem:[#allocation0]]
  $region18: #{weight_quantizer_wrapper_forward.2} parent=0
    _
  %s5 = ssub.s32 1, %s3
  %s6 = scalar_select 0, %s5, %s3
  // Predicated region
  $region2: #{weight_quantizer_wrapper_forward.2} parent=0 // pred_check
    _
  $region3: #{weight_quantizer_wrapper_forward.2} parent=0 // pred_check_branch
    %8 = sbr.rel (0) target = $region5
  $region4: #{weight_quantizer_wrapper_forward.2} parent=0 // pred_region
    _
  $region5: #{weight_quantizer_wrapper_forward.2} parent=0 // pred_fallthru
    _
  // Predicated region
  $region6: #{weight_quantizer_wrapper_forward.2} parent=0 // pred_check
    _
  $region7: #{weight_quantizer_wrapper_forward.2} parent=0 // pred_check_branch
    %10 = sbr.rel (0) target = $region9
  $region8: #{weight_quantizer_wrapper_forward.2} parent=0 // pred_region
    _
  $region9: #{weight_quantizer_wrapper_forward.2} parent=0 // pred_fallthru
    _
  %v11 = vld [vmem:[%s0] sm:$0xff]
  %v12 = vld [vmem:[%s0 + $0x8] sm:$0xff]
  %v13 = vld [vmem:[%s0 + $0x10] sm:$0xff]
  %v14 = vld [vmem:[%s0 + $0x18] sm:$0xff]
  %v15 = vld [vmem:[%s0 + $0x20] sm:$0xf]
  %v16 = vld [vmem:[%s1] sm:$0x1]
  %v18 = vlaneseq
  %v19 = vshrl.u32 %v18, 7
  %v20 = vsub.s32 0, %v19
  %v21 = vrot.slane %v16, %v20
  %v23 = vrcp.pop %v21
  %v24 = vmul.f32 %v11, %v23
  %v25 = vmul.f32 %v12, %v23
  %v26 = vmul.f32 %v13, %v23
  %v27 = vmul.f32 %v14, %v23
  %v28 = vmul.f32 %v15, %v23
  %v29 = vround.ne.pseudo %v24
  %v30 = vround.ne.pseudo %v25
  %v31 = vround.ne.pseudo %v26
  %v32 = vround.ne.pseudo %v27
  %v33 = vround.ne.pseudo %v28
  %v34 = vmax.f32 %v29, -128.0
  %v35 = vmax.f32 %v30, -128.0
  %v36 = vmax.f32 %v31, -128.0
  %v37 = vmax.f32 %v32, -128.0
  %v38 = vmax.f32 %v33, -128.0
  %v39 = vmin.f32 %v34, 127.0
  %v40 = vmin.f32 %v35, 127.0
  %v41 = vmin.f32 %v36, 127.0
  %v42 = vmin.f32 %v37, 127.0
  %v43 = vmin.f32 %v38, 127.0
  %v44 = vmul.f32 %v39, %v21
  %v45 = vmul.f32 %v40, %v21
  %v46 = vmul.f32 %v41, %v21
  %v47 = vmul.f32 %v42, %v21
  %v48 = vmul.f32 %v43, %v21
  %v49 = vpack.c.bf16 %v45, %v44
  %v50 = vpack.c.bf16 %v47, %v46
  %v51 = vpack.c.bf16 %v48, %v48
  %v55 = vunpack.c.l.b16 %v49
  %v56 = vunpack.c.h.b16 %v49
  %v57 = vunpack.c.l.b16 %v50
  %v58 = vunpack.c.h.b16 %v50
  %v59 = vunpack.c.l.b16 %v51
  %v60 = vpack.c.b16 %v55, %v55
  %v61 = vpack.c.b16 %v56, %v56
  %v62 = vpack.c.b16 %v57, %v57
  %v63 = vpack.c.b16 %v58, %v58
  %v64 = vpack.c.b16 %v59, %v59
  %70 = vst [vmem:[%s2] sm:$0xf] %v60
  %71 = vst [vmem:[%s2 + $0x4] sm:$0xf] %v61
  %72 = vst [vmem:[%s2 + $0x8] sm:$0xf] %v62
  %73 = vst [vmem:[%s2 + $0xc] sm:$0xf] %v63
  %74 = vst [vmem:[%s2 + $0x10] sm:$0x3] %v64
  // Predicated region
  $region10: #{weight_quantizer_wrapper_forward.2} parent=0 // pred_check
    _
  $region11: #{weight_quantizer_wrapper_forward.2} parent=0 // pred_check_branch
    %76 = sbr.rel (0) target = $region13
  $region12: #{weight_quantizer_wrapper_forward.2} parent=0 // pred_region
    _
  $region13: #{weight_quantizer_wrapper_forward.2} parent=0 // pred_fallthru
    _
  // Predicated region
  $region14: #{weight_quantizer_wrapper_forward.2} parent=0 // pred_check
    _
  $region15: #{weight_quantizer_wrapper_forward.2} parent=0 // pred_check_branch
    %78 = sbr.rel (0) target = $region17
  $region16: #{weight_quantizer_wrapper_forward.2} parent=0 // pred_region
    _
  $region17: #{weight_quantizer_wrapper_forward.2} parent=0 // pred_fallthru
    _

// kernel: weight_quantizer_wrapper_forward.3
$region0: #{weight_quantizer_wrapper_forward.3}
  #allocation0 [shape = 'u32[]', space=smem, size = 0x4, offset = 0x4, fixed_abs, tag = 'smem constant byte address 0x4 - core index']
  #allocation1 [shape = 'u32[144,128]{1,0:T(1,128)}', space=vmem, size = 0x12000, scoped, tag = 'internal scratch']
  %s0 = inlined_call_operand.vmem [shape: bf16[512,36], index: 0, kind: input, shape index: {}]
  %s1 = inlined_call_operand.vmem [shape: bf16[36,128], index: 1, kind: input, shape index: {}]
  %s2 = inlined_call_operand.vmem [shape: f32[1,128], index: 2, kind: input, shape index: {}]
  %s3 = inlined_call_operand.vmem [shape: f32[512,128], index: 3, kind: output, shape index: {}]
  %s4 = sld [smem:[#allocation0]]
  $region22: #{weight_quantizer_wrapper_forward.3} parent=0
    _
  %s6 = ssub.s32 1, %s4
  %s7 = scalar_select 0, %s6, %s4
  // Predicated region
  $region2: #{weight_quantizer_wrapper_forward.3} parent=0 // pred_check
    _
  $region3: #{weight_quantizer_wrapper_forward.3} parent=0 // pred_check_branch
    %9 = sbr.rel (0) target = $region5
  $region4: #{weight_quantizer_wrapper_forward.3} parent=0 // pred_region
    _
  $region5: #{weight_quantizer_wrapper_forward.3} parent=0 // pred_fallthru
    _
  // Predicated region
  $region6: #{weight_quantizer_wrapper_forward.3} parent=0 // pred_check
    _
  $region7: #{weight_quantizer_wrapper_forward.3} parent=0 // pred_check_branch
    %11 = sbr.rel (0) target = $region9
  $region8: #{weight_quantizer_wrapper_forward.3} parent=0 // pred_region
    _
  $region9: #{weight_quantizer_wrapper_forward.3} parent=0 // pred_fallthru
    _
  // Predicated region
  $region10: #{weight_quantizer_wrapper_forward.3} parent=0 // pred_check
    _
  $region11: #{weight_quantizer_wrapper_forward.3} parent=0 // pred_check_branch
    %13 = sbr.rel (0) target = $region13
  $region12: #{weight_quantizer_wrapper_forward.3} parent=0 // pred_region
    _
  $region13: #{weight_quantizer_wrapper_forward.3} parent=0 // pred_fallthru
    _
  %v15 = vld [vmem:[%s0] sm:$0xf]
  %v16 = vld [vmem:[%s0 + $0x4] sm:$0xf]
  %v17 = vld [vmem:[%s0 + $0x8] sm:$0xf]
  %v18 = vld [vmem:[%s0 + $0xc] sm:$0xf]
  %v19 = vld [vmem:[%s0 + $0x10] sm:$0xf]
  %v20 = vld [vmem:[%s0 + $0x14] sm:$0xf]
  %v21 = vld [vmem:[%s0 + $0x18] sm:$0xf]
  %v22 = vld [vmem:[%s0 + $0x1c] sm:$0xf]
  %v23 = vld [vmem:[%s0 + $0x20] sm:$0xf]
  %v24 = vld [vmem:[%s0 + $0x24] sm:$0xf]
  %v25 = vld [vmem:[%s0 + $0x28] sm:$0xf]
  %v26 = vld [vmem:[%s0 + $0x2c] sm:$0xf]
  %v27 = vld [vmem:[%s0 + $0x30] sm:$0xf]
  %v28 = vld [vmem:[%s0 + $0x34] sm:$0xf]
  %v29 = vld [vmem:[%s0 + $0x38] sm:$0xf]
  %v30 = vld [vmem:[%s0 + $0x3c] sm:$0xf]
  %v31 = vld [vmem:[%s0 + $0x40] sm:$0xf]
  %v32 = vld [vmem:[%s0 + $0x44] sm:$0xf]
  %v33 = vld [vmem:[%s0 + $0x48] sm:$0xf]
  %v34 = vld [vmem:[%s0 + $0x4c] sm:$0xf]
  %v35 = vld [vmem:[%s0 + $0x50] sm:$0xf]
  %v36 = vld [vmem:[%s0 + $0x54] sm:$0xf]
  %v37 = vld [vmem:[%s0 + $0x58] sm:$0xf]
  %v38 = vld [vmem:[%s0 + $0x5c] sm:$0xf]
  %v39 = vld [vmem:[%s0 + $0x60] sm:$0xf]
  %v40 = vld [vmem:[%s0 + $0x64] sm:$0xf]
  %v41 = vld [vmem:[%s0 + $0x68] sm:$0xf]
  %v42 = vld [vmem:[%s0 + $0x6c] sm:$0xf]
  %v43 = vld [vmem:[%s0 + $0x70] sm:$0xf]
  %v44 = vld [vmem:[%s0 + $0x74] sm:$0xf]
  %v45 = vld [vmem:[%s0 + $0x78] sm:$0xf]
  %v46 = vld [vmem:[%s0 + $0x7c] sm:$0xf]
  %v47 = vld [vmem:[%s0 + $0x80] sm:$0xf]
  %v48 = vld [vmem:[%s0 + $0x84] sm:$0xf]
  %v49 = vld [vmem:[%s0 + $0x88] sm:$0xf]
  %v50 = vld [vmem:[%s0 + $0x8c] sm:$0xf]
  %v51 = vld [vmem:[%s0 + $0x90] sm:$0xf]
  %v52 = vld [vmem:[%s0 + $0x94] sm:$0xf]
  %v53 = vld [vmem:[%s0 + $0x98] sm:$0xf]
  %v54 = vld [vmem:[%s0 + $0x9c] sm:$0xf]
  %v55 = vld [vmem:[%s0 + $0xa0] sm:$0xf]
  %v56 = vld [vmem:[%s0 + $0xa4] sm:$0xf]
  %v57 = vld [vmem:[%s0 + $0xa8] sm:$0xf]
  %v58 = vld [vmem:[%s0 + $0xac] sm:$0xf]
  %v59 = vld [vmem:[%s0 + $0xb0] sm:$0xf]
  %v60 = vld [vmem:[%s0 + $0xb4] sm:$0xf]
  %v61 = vld [vmem:[%s0 + $0xb8] sm:$0xf]
  %v62 = vld [vmem:[%s0 + $0xbc] sm:$0xf]
  %v63 = vld [vmem:[%s0 + $0xc0] sm:$0xf]
  %v64 = vld [vmem:[%s0 + $0xc4] sm:$0xf]
  %v65 = vld [vmem:[%s0 + $0xc8] sm:$0xf]
  %v66 = vld [vmem:[%s0 + $0xcc] sm:$0xf]
  %v67 = vld [vmem:[%s0 + $0xd0] sm:$0xf]
  %v68 = vld [vmem:[%s0 + $0xd4] sm:$0xf]
  %v69 = vld [vmem:[%s0 + $0xd8] sm:$0xf]
  %v70 = vld [vmem:[%s0 + $0xdc] sm:$0xf]
  %v71 = vld [vmem:[%s0 + $0xe0] sm:$0xf]
  %v72 = vld [vmem:[%s0 + $0xe4] sm:$0xf]
  %v73 = vld [vmem:[%s0 + $0xe8] sm:$0xf]
  %v74 = vld [vmem:[%s0 + $0xec] sm:$0xf]
  %v75 = vld [vmem:[%s0 + $0xf0] sm:$0xf]
  %v76 = vld [vmem:[%s0 + $0xf4] sm:$0xf]
  %v77 = vld [vmem:[%s0 + $0xf8] sm:$0xf]
  %v78 = vld [vmem:[%s0 + $0xfc] sm:$0xf]
  %v79 = vld [vmem:[%s1] sm:$0xf]
  %v80 = vld [vmem:[%s1 + $0x4] sm:$0xf]
  %v81 = vld [vmem:[%s1 + $0x8] sm:$0xf]
  %v82 = vld [vmem:[%s1 + $0xc] sm:$0xf]
  %v83 = vld [vmem:[%s1 + $0x10] sm:$0x3]
  %v84 = vld [vmem:[%s2] sm:$0x1]
  %v86 = vlaneseq
  %v87 = vshrl.u32 %v86, 7
  %v88 = vsub.s32 0, %v87
  %v89 = vrot.slane %v84, %v88
  %v155 = vunpack.c.l.b16 %v15
  %v156 = vunpack.c.l.b16 %v16
  %v157 = vunpack.c.l.b16 %v17
  %v158 = vunpack.c.l.b16 %v18
  %v159 = vunpack.c.l.b16 %v19
  %v160 = vunpack.c.l.b16 %v20
  %v161 = vunpack.c.l.b16 %v21
  %v162 = vunpack.c.l.b16 %v22
  %v163 = vunpack.c.l.b16 %v23
  %v164 = vunpack.c.l.b16 %v24
  %v165 = vunpack.c.l.b16 %v25
  %v166 = vunpack.c.l.b16 %v26
  %v167 = vunpack.c.l.b16 %v27
  %v168 = vunpack.c.l.b16 %v28
  %v169 = vunpack.c.l.b16 %v29
  %v170 = vunpack.c.l.b16 %v30
  %v171 = vunpack.c.l.b16 %v31
  %v172 = vunpack.c.l.b16 %v32
  %v173 = vunpack.c.l.b16 %v33
  %v174 = vunpack.c.l.b16 %v34
  %v175 = vunpack.c.l.b16 %v35
  %v176 = vunpack.c.l.b16 %v36
  %v177 = vunpack.c.l.b16 %v37
  %v178 = vunpack.c.l.b16 %v38
  %v179 = vunpack.c.l.b16 %v39
  %v180 = vunpack.c.l.b16 %v40
  %v181 = vunpack.c.l.b16 %v41
  %v182 = vunpack.c.l.b16 %v42
  %v183 = vunpack.c.l.b16 %v43
  %v184 = vunpack.c.l.b16 %v44
  %v185 = vunpack.c.l.b16 %v45
  %v186 = vunpack.c.l.b16 %v46
  %v187 = vunpack.c.l.b16 %v47
  %v188 = vunpack.c.l.b16 %v48
  %v189 = vunpack.c.l.b16 %v49
  %v190 = vunpack.c.l.b16 %v50
  %v191 = vunpack.c.l.b16 %v51
  %v192 = vunpack.c.l.b16 %v52
  %v193 = vunpack.c.l.b16 %v53
  %v194 = vunpack.c.l.b16 %v54
  %v195 = vunpack.c.l.b16 %v55
  %v196 = vunpack.c.l.b16 %v56
  %v197 = vunpack.c.l.b16 %v57
  %v198 = vunpack.c.l.b16 %v58
  %v199 = vunpack.c.l.b16 %v59
  %v200 = vunpack.c.l.b16 %v60
  %v201 = vunpack.c.l.b16 %v61
  %v202 = vunpack.c.l.b16 %v62
  %v203 = vunpack.c.l.b16 %v63
  %v204 = vunpack.c.l.b16 %v64
  %v205 = vunpack.c.l.b16 %v65
  %v206 = vunpack.c.l.b16 %v66
  %v207 = vunpack.c.l.b16 %v67
  %v208 = vunpack.c.l.b16 %v68
  %v209 = vunpack.c.l.b16 %v69
  %v210 = vunpack.c.l.b16 %v70
  %v211 = vunpack.c.l.b16 %v71
  %v212 = vunpack.c.l.b16 %v72
  %v213 = vunpack.c.l.b16 %v73
  %v214 = vunpack.c.l.b16 %v74
  %v215 = vunpack.c.l.b16 %v75
  %v216 = vunpack.c.l.b16 %v76
  %v217 = vunpack.c.l.b16 %v77
  %v218 = vunpack.c.l.b16 %v78
  %v219 = vpack.c.b16 %v156, %v155
  %v220 = vpack.c.b16 %v158, %v157
  %v221 = vpack.c.b16 %v160, %v159
  %v222 = vpack.c.b16 %v162, %v161
  %v223 = vpack.c.b16 %v164, %v163
  %v224 = vpack.c.b16 %v166, %v165
  %v225 = vpack.c.b16 %v168, %v167
  %v226 = vpack.c.b16 %v170, %v169
  %v227 = vpack.c.b16 %v172, %v171
  %v228 = vpack.c.b16 %v174, %v173
  %v229 = vpack.c.b16 %v176, %v175
  %v230 = vpack.c.b16 %v178, %v177
  %v231 = vpack.c.b16 %v180, %v179
  %v232 = vpack.c.b16 %v182, %v181
  %v233 = vpack.c.b16 %v184, %v183
  %v234 = vpack.c.b16 %v186, %v185
  %v235 = vpack.c.b16 %v188, %v187
  %v236 = vpack.c.b16 %v190, %v189
  %v237 = vpack.c.b16 %v192, %v191
  %v238 = vpack.c.b16 %v194, %v193
  %v239 = vpack.c.b16 %v196, %v195
  %v240 = vpack.c.b16 %v198, %v197
  %v241 = vpack.c.b16 %v200, %v199
  %v242 = vpack.c.b16 %v202, %v201
  %v243 = vpack.c.b16 %v204, %v203
  %v244 = vpack.c.b16 %v206, %v205
  %v245 = vpack.c.b16 %v208, %v207
  %v246 = vpack.c.b16 %v210, %v209
  %v247 = vpack.c.b16 %v212, %v211
  %v248 = vpack.c.b16 %v214, %v213
  %v249 = vpack.c.b16 %v216, %v215
  %v250 = vpack.c.b16 %v218, %v217
  %v256 = vunpack.c.l.b16 %v79
  %v257 = vunpack.c.l.b16 %v80
  %v258 = vunpack.c.l.b16 %v81
  %v259 = vunpack.c.l.b16 %v82
  %v260 = vunpack.c.l.b16 %v83
  %v261 = vpack.c.b16 %v257, %v256
  %v262 = vpack.c.b16 %v259, %v258
  %v263 = vpack.c.b16 %v260, %v260
  %vm266 = vcmask 293888
  %v268 = vsel %vm266, %v219, 0
  %v271 = vsel %vm266, %v220, 0
  %v274 = vsel %vm266, %v221, 0
  %v277 = vsel %vm266, %v222, 0
  %v280 = vsel %vm266, %v223, 0
  %v283 = vsel %vm266, %v224, 0
  %v286 = vsel %vm266, %v225, 0
  %v289 = vsel %vm266, %v226, 0
  %v292 = vsel %vm266, %v227, 0
  %v295 = vsel %vm266, %v228, 0
  %v298 = vsel %vm266, %v229, 0
  %v301 = vsel %vm266, %v230, 0
  %v304 = vsel %vm266, %v231, 0
  %v307 = vsel %vm266, %v232, 0
  %v310 = vsel %vm266, %v233, 0
  %v313 = vsel %vm266, %v234, 0
  %v316 = vsel %vm266, %v235, 0
  %v319 = vsel %vm266, %v236, 0
  %v322 = vsel %vm266, %v237, 0
  %v325 = vsel %vm266, %v238, 0
  %v328 = vsel %vm266, %v239, 0
  %v331 = vsel %vm266, %v240, 0
  %v334 = vsel %vm266, %v241, 0
  %v337 = vsel %vm266, %v242, 0
  %v340 = vsel %vm266, %v243, 0
  %v343 = vsel %vm266, %v244, 0
  %v346 = vsel %vm266, %v245, 0
  %v349 = vsel %vm266, %v246, 0
  %v352 = vsel %vm266, %v247, 0
  %v355 = vsel %vm266, %v248, 0
  %v358 = vsel %vm266, %v249, 0
  %v361 = vsel %vm266, %v250, 0
  %vm363 = vcmask 1041408
  %v365 = vsel %vm363, %v263, 0
  %367 = vmatprep.subr.bf16.mxu0 0
  %368 = vmatpush1.bf16.msra.mxu0 0
  %369 = vmatprep.subr.bf16.mxu0 0
  %370 = vmatpush1.bf16.msra.mxu0 0
  %371 = vmatprep.subr.bf16.mxu0 0
  %372 = vmatpush1.bf16.msra.mxu0 0
  %373 = vmatprep.subr.bf16.mxu0 0
  %374 = vmatpush1.bf16.msra.mxu0 0
  %375 = vmatprep.subr.bf16.mxu0 0
  %376 = vmatpush1.bf16.msra.mxu0 0
  %377 = vmatprep.subr.bf16.mxu0 0
  %378 = vmatpush1.bf16.msra.mxu0 %v365
  %379 = vmatprep.subr.bf16.mxu0 0
  %380 = vmatpush1.bf16.msra.mxu0 %v262
  %381 = vmatprep.subr.bf16.mxu0 0
  %382 = vmatpush1.bf16.msra.mxu0 %v261
  %383 = vmatprep.subr.bf16.mxu0 0
  %384 = vmatpush2.bf16.msra.mxu0 0
  %385 = vmatprep.subr.bf16.mxu0 0
  %386 = vmatpush2.bf16.msra.mxu0 0
  %387 = vmatprep.subr.bf16.mxu0 0
  %388 = vmatpush2.bf16.msra.mxu0 0
  %389 = vmatprep.subr.bf16.mxu0 0
  %390 = vmatpush2.bf16.msra.mxu0 0
  %391 = vmatprep.subr.bf16.mxu0 0
  %392 = vmatpush2.bf16.msra.mxu0 0
  %393 = vmatprep.subr.bf16.mxu0 0
  %394 = vmatpush2.bf16.msra.mxu0 0
  %395 = vmatprep.subr.bf16.mxu0 0
  %396 = vmatpush2.bf16.msra.mxu0 0
  %397 = vmatprep.subr.bf16.mxu0 0
  %398 = vmatpush2.bf16.msra.mxu0 0
  %399 = vmatprep.mubr.bf16.mxu0 0
  %400 = vmatmul.mubr.bf16.gmra.mxu0 %v268
  %v401 = vpop.f32.mrf.mxu0
  %v402 = vadd.f32 %v89, %v401
  %v403 = vpop.f32.mrf.mxu0
  %v404 = vpop.f32.mrf.mxu0
  %v405 = vadd.f32 %v89, %v404
  %v406 = vpop.f32.mrf.mxu0
  %407 = vmatprep.mubr.bf16.mxu0 0
  %408 = vmatmul.mubr.bf16.gmra.mxu0 %v271
  %v409 = vpop.f32.mrf.mxu0
  %v410 = vadd.f32 %v89, %v409
  %v411 = vpop.f32.mrf.mxu0
  %v412 = vpop.f32.mrf.mxu0
  %v413 = vadd.f32 %v89, %v412
  %v414 = vpop.f32.mrf.mxu0
  %415 = vmatprep.mubr.bf16.mxu0 0
  %416 = vmatmul.mubr.bf16.gmra.mxu0 %v274
  %v417 = vpop.f32.mrf.mxu0
  %v418 = vadd.f32 %v89, %v417
  %v419 = vpop.f32.mrf.mxu0
  %v420 = vpop.f32.mrf.mxu0
  %v421 = vadd.f32 %v89, %v420
  %v422 = vpop.f32.mrf.mxu0
  %423 = vmatprep.mubr.bf16.mxu0 0
  %424 = vmatmul.mubr.bf16.gmra.mxu0 %v277
  %v425 = vpop.f32.mrf.mxu0
  %v426 = vadd.f32 %v89, %v425
  %v427 = vpop.f32.mrf.mxu0
  %v428 = vpop.f32.mrf.mxu0
  %v429 = vadd.f32 %v89, %v428
  %v430 = vpop.f32.mrf.mxu0
  %431 = vmatprep.mubr.bf16.mxu0 0
  %432 = vmatmul.mubr.bf16.gmra.mxu0 %v280
  %v433 = vpop.f32.mrf.mxu0
  %v434 = vadd.f32 %v89, %v433
  %v435 = vpop.f32.mrf.mxu0
  %v436 = vpop.f32.mrf.mxu0
  %v437 = vadd.f32 %v89, %v436
  %v438 = vpop.f32.mrf.mxu0
  %439 = vmatprep.mubr.bf16.mxu0 0
  %440 = vmatmul.mubr.bf16.gmra.mxu0 %v283
  %v441 = vpop.f32.mrf.mxu0
  %v442 = vadd.f32 %v89, %v441
  %v443 = vpop.f32.mrf.mxu0
  %v444 = vpop.f32.mrf.mxu0
  %v445 = vadd.f32 %v89, %v444
  %v446 = vpop.f32.mrf.mxu0
  %447 = vmatprep.mubr.bf16.mxu0 0
  %448 = vmatmul.mubr.bf16.gmra.mxu0 %v286
  %v449 = vpop.f32.mrf.mxu0
  %v450 = vadd.f32 %v89, %v449
  %v451 = vpop.f32.mrf.mxu0
  %v452 = vpop.f32.mrf.mxu0
  %v453 = vadd.f32 %v89, %v452
  %v454 = vpop.f32.mrf.mxu0
  %455 = vmatprep.mubr.bf16.mxu0 0
  %456 = vmatmul.mubr.bf16.gmra.mxu0 %v289
  %v457 = vpop.f32.mrf.mxu0
  %v458 = vadd.f32 %v89, %v457
  %v459 = vpop.f32.mrf.mxu0
  %v460 = vpop.f32.mrf.mxu0
  %v461 = vadd.f32 %v89, %v460
  %v462 = vpop.f32.mrf.mxu0
  %463 = vmatprep.mubr.bf16.mxu0 0
  %464 = vmatmul.mubr.bf16.gmra.mxu0 %v292
  %v465 = vpop.f32.mrf.mxu0
  %v466 = vadd.f32 %v89, %v465
  %v467 = vpop.f32.mrf.mxu0
  %v468 = vpop.f32.mrf.mxu0
  %v469 = vadd.f32 %v89, %v468
  %v470 = vpop.f32.mrf.mxu0
  %471 = vmatprep.mubr.bf16.mxu0 0
  %472 = vmatmul.mubr.bf16.gmra.mxu0 %v295
  %v473 = vpop.f32.mrf.mxu0
  %v474 = vadd.f32 %v89, %v473
  %v475 = vpop.f32.mrf.mxu0
  %v476 = vpop.f32.mrf.mxu0
  %v477 = vadd.f32 %v89, %v476
  %v478 = vpop.f32.mrf.mxu0
  %479 = vmatprep.mubr.bf16.mxu0 0
  %480 = vmatmul.mubr.bf16.gmra.mxu0 %v298
  %v481 = vpop.f32.mrf.mxu0
  %v482 = vadd.f32 %v89, %v481
  %v483 = vpop.f32.mrf.mxu0
  %v484 = vpop.f32.mrf.mxu0
  %v485 = vadd.f32 %v89, %v484
  %v486 = vpop.f32.mrf.mxu0
  %487 = vmatprep.mubr.bf16.mxu0 0
  %488 = vmatmul.mubr.bf16.gmra.mxu0 %v301
  %v489 = vpop.f32.mrf.mxu0
  %v490 = vadd.f32 %v89, %v489
  %v491 = vpop.f32.mrf.mxu0
  %v492 = vpop.f32.mrf.mxu0
  %v493 = vadd.f32 %v89, %v492
  %v494 = vpop.f32.mrf.mxu0
  %495 = vmatprep.mubr.bf16.mxu0 0
  %496 = vmatmul.mubr.bf16.gmra.mxu0 %v304
  %v497 = vpop.f32.mrf.mxu0
  %v498 = vadd.f32 %v89, %v497
  %v499 = vpop.f32.mrf.mxu0
  %v500 = vpop.f32.mrf.mxu0
  %v501 = vadd.f32 %v89, %v500
  %v502 = vpop.f32.mrf.mxu0
  %503 = vmatprep.mubr.bf16.mxu0 0
  %504 = vmatmul.mubr.bf16.gmra.mxu0 %v307
  %v505 = vpop.f32.mrf.mxu0
  %v506 = vadd.f32 %v89, %v505
  %v507 = vpop.f32.mrf.mxu0
  %v508 = vpop.f32.mrf.mxu0
  %v509 = vadd.f32 %v89, %v508
  %v510 = vpop.f32.mrf.mxu0
  %511 = vmatprep.mubr.bf16.mxu0 0
  %512 = vmatmul.mubr.bf16.gmra.mxu0 %v310
  %v513 = vpop.f32.mrf.mxu0
  %v514 = vadd.f32 %v89, %v513
  %v515 = vpop.f32.mrf.mxu0
  %v516 = vpop.f32.mrf.mxu0
  %v517 = vadd.f32 %v89, %v516
  %v518 = vpop.f32.mrf.mxu0
  %519 = vmatprep.mubr.bf16.mxu0 0
  %520 = vmatmul.mubr.bf16.gmra.mxu0 %v313
  %v521 = vpop.f32.mrf.mxu0
  %v522 = vadd.f32 %v89, %v521
  %v523 = vpop.f32.mrf.mxu0
  %v524 = vpop.f32.mrf.mxu0
  %v525 = vadd.f32 %v89, %v524
  %v526 = vpop.f32.mrf.mxu0
  %527 = vmatprep.mubr.bf16.mxu0 0
  %528 = vmatmul.mubr.bf16.gmra.mxu0 %v316
  %v529 = vpop.f32.mrf.mxu0
  %v530 = vadd.f32 %v89, %v529
  %v531 = vpop.f32.mrf.mxu0
  %v532 = vpop.f32.mrf.mxu0
  %v533 = vadd.f32 %v89, %v532
  %v534 = vpop.f32.mrf.mxu0
  %535 = vmatprep.mubr.bf16.mxu0 0
  %536 = vmatmul.mubr.bf16.gmra.mxu0 %v319
  %v537 = vpop.f32.mrf.mxu0
  %v538 = vadd.f32 %v89, %v537
  %v539 = vpop.f32.mrf.mxu0
  %v540 = vpop.f32.mrf.mxu0
  %v541 = vadd.f32 %v89, %v540
  %v542 = vpop.f32.mrf.mxu0
  %543 = vmatprep.mubr.bf16.mxu0 0
  %544 = vmatmul.mubr.bf16.gmra.mxu0 %v322
  %v545 = vpop.f32.mrf.mxu0
  %v546 = vadd.f32 %v89, %v545
  %v547 = vpop.f32.mrf.mxu0
  %v548 = vpop.f32.mrf.mxu0
  %v549 = vadd.f32 %v89, %v548
  %v550 = vpop.f32.mrf.mxu0
  %551 = vmatprep.mubr.bf16.mxu0 0
  %552 = vmatmul.mubr.bf16.gmra.mxu0 %v325
  %v553 = vpop.f32.mrf.mxu0
  %v554 = vadd.f32 %v89, %v553
  %v555 = vpop.f32.mrf.mxu0
  %v556 = vpop.f32.mrf.mxu0
  %v557 = vadd.f32 %v89, %v556
  %v558 = vpop.f32.mrf.mxu0
  %559 = vmatprep.mubr.bf16.mxu0 0
  %560 = vmatmul.mubr.bf16.gmra.mxu0 %v328
  %v561 = vpop.f32.mrf.mxu0
  %v562 = vadd.f32 %v89, %v561
  %v563 = vpop.f32.mrf.mxu0
  %v564 = vpop.f32.mrf.mxu0
  %v565 = vadd.f32 %v89, %v564
  %v566 = vpop.f32.mrf.mxu0
  %567 = vmatprep.mubr.bf16.mxu0 0
  %568 = vmatmul.mubr.bf16.gmra.mxu0 %v331
  %v569 = vpop.f32.mrf.mxu0
  %v570 = vadd.f32 %v89, %v569
  %v571 = vpop.f32.mrf.mxu0
  %v572 = vpop.f32.mrf.mxu0
  %v573 = vadd.f32 %v89, %v572
  %v574 = vpop.f32.mrf.mxu0
  %575 = vmatprep.mubr.bf16.mxu0 0
  %576 = vmatmul.mubr.bf16.gmra.mxu0 %v334
  %v577 = vpop.f32.mrf.mxu0
  %v578 = vadd.f32 %v89, %v577
  %v579 = vpop.f32.mrf.mxu0
  %v580 = vpop.f32.mrf.mxu0
  %v581 = vadd.f32 %v89, %v580
  %v582 = vpop.f32.mrf.mxu0
  %583 = vmatprep.mubr.bf16.mxu0 0
  %584 = vmatmul.mubr.bf16.gmra.mxu0 %v337
  %v585 = vpop.f32.mrf.mxu0
  %v586 = vadd.f32 %v89, %v585
  %v587 = vpop.f32.mrf.mxu0
  %v588 = vpop.f32.mrf.mxu0
  %v589 = vadd.f32 %v89, %v588
  %v590 = vpop.f32.mrf.mxu0
  %591 = vmatprep.mubr.bf16.mxu0 0
  %592 = vmatmul.mubr.bf16.gmra.mxu0 %v340
  %v593 = vpop.f32.mrf.mxu0
  %v594 = vadd.f32 %v89, %v593
  %v595 = vpop.f32.mrf.mxu0
  %v596 = vpop.f32.mrf.mxu0
  %v597 = vadd.f32 %v89, %v596
  %v598 = vpop.f32.mrf.mxu0
  %599 = vmatprep.mubr.bf16.mxu0 0
  %600 = vmatmul.mubr.bf16.gmra.mxu0 %v343
  %v601 = vpop.f32.mrf.mxu0
  %v602 = vadd.f32 %v89, %v601
  %v603 = vpop.f32.mrf.mxu0
  %v604 = vpop.f32.mrf.mxu0
  %v605 = vadd.f32 %v89, %v604
  %v606 = vpop.f32.mrf.mxu0
  %607 = vmatprep.mubr.bf16.mxu0 0
  %608 = vmatmul.mubr.bf16.gmra.mxu0 %v346
  %v609 = vpop.f32.mrf.mxu0
  %v610 = vadd.f32 %v89, %v609
  %v611 = vpop.f32.mrf.mxu0
  %v612 = vpop.f32.mrf.mxu0
  %v613 = vadd.f32 %v89, %v612
  %v614 = vpop.f32.mrf.mxu0
  %615 = vmatprep.mubr.bf16.mxu0 0
  %616 = vmatmul.mubr.bf16.gmra.mxu0 %v349
  %v617 = vpop.f32.mrf.mxu0
  %v618 = vadd.f32 %v89, %v617
  %v619 = vpop.f32.mrf.mxu0
  %v620 = vpop.f32.mrf.mxu0
  %v621 = vadd.f32 %v89, %v620
  %v622 = vpop.f32.mrf.mxu0
  %623 = vmatprep.mubr.bf16.mxu0 0
  %624 = vmatmul.mubr.bf16.gmra.mxu0 %v352
  %v625 = vpop.f32.mrf.mxu0
  %v626 = vadd.f32 %v89, %v625
  %v627 = vpop.f32.mrf.mxu0
  %v628 = vpop.f32.mrf.mxu0
  %v629 = vadd.f32 %v89, %v628
  %v630 = vpop.f32.mrf.mxu0
  %631 = vmatprep.mubr.bf16.mxu0 0
  %632 = vmatmul.mubr.bf16.gmra.mxu0 %v355
  %v633 = vpop.f32.mrf.mxu0
  %v634 = vadd.f32 %v89, %v633
  %v635 = vpop.f32.mrf.mxu0
  %v636 = vpop.f32.mrf.mxu0
  %v637 = vadd.f32 %v89, %v636
  %v638 = vpop.f32.mrf.mxu0
  %639 = vmatprep.mubr.bf16.mxu0 0
  %640 = vmatmul.mubr.bf16.gmra.mxu0 %v358
  %v641 = vpop.f32.mrf.mxu0
  %v642 = vadd.f32 %v89, %v641
  %v643 = vpop.f32.mrf.mxu0
  %v644 = vpop.f32.mrf.mxu0
  %v645 = vadd.f32 %v89, %v644
  %v646 = vpop.f32.mrf.mxu0
  %647 = vmatprep.mubr.bf16.mxu0 0
  %648 = vmatmul.mubr.bf16.gmra.mxu0 %v361
  %v649 = vpop.f32.mrf.mxu0
  %v650 = vadd.f32 %v89, %v649
  %v651 = vpop.f32.mrf.mxu0
  %v652 = vpop.f32.mrf.mxu0
  %v653 = vadd.f32 %v89, %v652
  %v654 = vpop.f32.mrf.mxu0
  %655 = vdwg.mxu0
  %656 = vst [vmem:[%s3] sm:$0xff] %v402
  %657 = vst [vmem:[%s3 + $0x8] sm:$0xff] %v405
  %658 = vst [vmem:[%s3 + $0x10] sm:$0xff] %v410
  %659 = vst [vmem:[%s3 + $0x18] sm:$0xff] %v413
  %660 = vst [vmem:[%s3 + $0x20] sm:$0xff] %v418
  %661 = vst [vmem:[%s3 + $0x28] sm:$0xff] %v421
  %662 = vst [vmem:[%s3 + $0x30] sm:$0xff] %v426
  %663 = vst [vmem:[%s3 + $0x38] sm:$0xff] %v429
  %664 = vst [vmem:[%s3 + $0x40] sm:$0xff] %v434
  %665 = vst [vmem:[%s3 + $0x48] sm:$0xff] %v437
  %666 = vst [vmem:[%s3 + $0x50] sm:$0xff] %v442
  %667 = vst [vmem:[%s3 + $0x58] sm:$0xff] %v445
  %668 = vst [vmem:[%s3 + $0x60] sm:$0xff] %v450
  %669 = vst [vmem:[%s3 + $0x68] sm:$0xff] %v453
  %670 = vst [vmem:[%s3 + $0x70] sm:$0xff] %v458
  %671 = vst [vmem:[%s3 + $0x78] sm:$0xff] %v461
  %672 = vst [vmem:[%s3 + $0x80] sm:$0xff] %v466
  %673 = vst [vmem:[%s3 + $0x88] sm:$0xff] %v469
  %674 = vst [vmem:[%s3 + $0x90] sm:$0xff] %v474
  %675 = vst [vmem:[%s3 + $0x98] sm:$0xff] %v477
  %676 = vst [vmem:[%s3 + $0xa0] sm:$0xff] %v482
  %677 = vst [vmem:[%s3 + $0xa8] sm:$0xff] %v485
  %678 = vst [vmem:[%s3 + $0xb0] sm:$0xff] %v490
  %679 = vst [vmem:[%s3 + $0xb8] sm:$0xff] %v493
  %680 = vst [vmem:[%s3 + $0xc0] sm:$0xff] %v498
  %681 = vst [vmem:[%s3 + $0xc8] sm:$0xff] %v501
  %682 = vst [vmem:[%s3 + $0xd0] sm:$0xff] %v506
  %683 = vst [vmem:[%s3 + $0xd8] sm:$0xff] %v509
  %684 = vst [vmem:[%s3 + $0xe0] sm:$0xff] %v514
  %685 = vst [vmem:[%s3 + $0xe8] sm:$0xff] %v517
  %686 = vst [vmem:[%s3 + $0xf0] sm:$0xff] %v522
  %687 = vst [vmem:[%s3 + $0xf8] sm:$0xff] %v525
  %688 = vst [vmem:[%s3 + $0x100] sm:$0xff] %v530
  %689 = vst [vmem:[%s3 + $0x108] sm:$0xff] %v533
  %690 = vst [vmem:[%s3 + $0x110] sm:$0xff] %v538
  %691 = vst [vmem:[%s3 + $0x118] sm:$0xff] %v541
  %692 = vst [vmem:[%s3 + $0x120] sm:$0xff] %v546
  %693 = vst [vmem:[%s3 + $0x128] sm:$0xff] %v549
  %694 = vst [vmem:[%s3 + $0x130] sm:$0xff] %v554
  %695 = vst [vmem:[%s3 + $0x138] sm:$0xff] %v557
  %696 = vst [vmem:[%s3 + $0x140] sm:$0xff] %v562
  %697 = vst [vmem:[%s3 + $0x148] sm:$0xff] %v565
  %698 = vst [vmem:[%s3 + $0x150] sm:$0xff] %v570
  %699 = vst [vmem:[%s3 + $0x158] sm:$0xff] %v573
  %700 = vst [vmem:[%s3 + $0x160] sm:$0xff] %v578
  %701 = vst [vmem:[%s3 + $0x168] sm:$0xff] %v581
  %702 = vst [vmem:[%s3 + $0x170] sm:$0xff] %v586
  %703 = vst [vmem:[%s3 + $0x178] sm:$0xff] %v589
  %704 = vst [vmem:[%s3 + $0x180] sm:$0xff] %v594
  %705 = vst [vmem:[%s3 + $0x188] sm:$0xff] %v597
  %706 = vst [vmem:[%s3 + $0x190] sm:$0xff] %v602
  %707 = vst [vmem:[%s3 + $0x198] sm:$0xff] %v605
  %708 = vst [vmem:[%s3 + $0x1a0] sm:$0xff] %v610
  %709 = vst [vmem:[%s3 + $0x1a8] sm:$0xff] %v613
  %710 = vst [vmem:[%s3 + $0x1b0] sm:$0xff] %v618
  %711 = vst [vmem:[%s3 + $0x1b8] sm:$0xff] %v621
  %712 = vst [vmem:[%s3 + $0x1c0] sm:$0xff] %v626
  %713 = vst [vmem:[%s3 + $0x1c8] sm:$0xff] %v629
  %714 = vst [vmem:[%s3 + $0x1d0] sm:$0xff] %v634
  %715 = vst [vmem:[%s3 + $0x1d8] sm:$0xff] %v637
  %716 = vst [vmem:[%s3 + $0x1e0] sm:$0xff] %v642
  %717 = vst [vmem:[%s3 + $0x1e8] sm:$0xff] %v645
  %718 = vst [vmem:[%s3 + $0x1f0] sm:$0xff] %v650
  %719 = vst [vmem:[%s3 + $0x1f8] sm:$0xff] %v653
  // Predicated region
  $region14: #{weight_quantizer_wrapper_forward.3} parent=0 // pred_check
    _
  $region15: #{weight_quantizer_wrapper_forward.3} parent=0 // pred_check_branch
    %721 = sbr.rel (0) target = $region17
  $region16: #{weight_quantizer_wrapper_forward.3} parent=0 // pred_region
    _
  $region17: #{weight_quantizer_wrapper_forward.3} parent=0 // pred_fallthru
    _
  // Predicated region
  $region18: #{weight_quantizer_wrapper_forward.3} parent=0 // pred_check
    _
  $region19: #{weight_quantizer_wrapper_forward.3} parent=0 // pred_check_branch
    %723 = sbr.rel (0) target = $region21
  $region20: #{weight_quantizer_wrapper_forward.3} parent=0 // pred_region
    _
  $region21: #{weight_quantizer_wrapper_forward.3} parent=0 // pred_fallthru
    _

</llo_original>
